<compile_context>
chip_gen: v6e
topology: v6e:2x2x1
jax: 0.10.0
libtpu: 0.0.40
codegen_flags: <defaults>
</compile_context>

<pallas_src>
import functools

import jax
import jax.numpy as jnp
from jax.experimental import pallas as pl
from jax.experimental.pallas import tpu as pltpu


def _round_up(a, m):
    return (a + m - 1) // m * m


def _bcb_kernel(x_ref, w_fir_ref, w_cls_ref, b_cls_ref, out_ref,
                xa_ref, tail_ref, *eacc_refs,
                num_firs, len_firs, t_out, tt, lead):
    """Grid: (batch blocks [parallel], time tiles [arbitrary]).

    Layout: batch on sublanes, time on lanes.
      x_ref     : (TB, TT)              VMEM   current time tile
      w_fir_ref : (num_FIRs, len_FIRs)  SMEM   scalar FIR taps
      w_cls_ref : (num_FIRs, C)         VMEM
      b_cls_ref : (1, C)                VMEM
      out_ref   : (TB, C)               VMEM   written on last time tile only
      xa_ref    : (TB, lead + TT)       VMEM scratch: [.. halo | tile] slab
      tail_ref  : (TB, max(halo,1))     VMEM scratch: last halo samples carry
      eacc_refs : num_FIRs x (TB, 1)    VMEM scratch: per-filter energy acc
    """
    t = pl.program_id(1)
    nt = pl.num_programs(1)
    halo = len_firs - 1

    @pl.when(t == 0)
    def _():
        if halo > 0:
            tail_ref[...] = jnp.zeros_like(tail_ref)
        for f in range(num_firs):
            eacc_refs[f][...] = jnp.zeros_like(eacc_refs[f])

    x_tile = x_ref[...].astype(jnp.float32)           # (TB, TT)
    tb = x_tile.shape[0]

    # Assemble [tail | tile] slab in VMEM scratch. The tile store is at a
    # 128-lane-aligned offset; the halo store is a tiny masked store.
    if halo > 0:
        xa_ref[:, lead - halo:lead] = tail_ref[...]
        tail_ref[...] = x_tile[:, tt - halo:tt]       # carry for next tile
    xa_ref[:, lead:lead + tt] = x_tile

    # Hoisted taps: one SMEM scalar read per tap per grid step.
    taps = [[w_fir_ref[f, k] for k in range(len_firs)]
            for f in range(num_firs)]

    # k-outer / f-inner MAC: one shifted slab view per tap, reused by all
    # filters; only num_FIRs accumulators live.
    accs = [jnp.zeros((tb, tt), jnp.float32) for _ in range(num_firs)]
    base = lead - halo
    for k in range(len_firs):                          # static, small
        xk = xa_ref[:, base + k:base + k + tt]         # (TB, TT) shifted view
        for f in range(num_firs):
            accs[f] = accs[f] + xk * taps[f][k]

    # Mask FIR outputs outside the valid [0, t_out) range (zero lead-in of the
    # first tile and zero padding of the last tile).
    j = jax.lax.broadcasted_iota(jnp.int32, (tb, tt), 1)
    g = t * tt - halo + j                              # global output index
    valid = jnp.logical_and(g >= 0, g < t_out)

    for f in range(num_firs):
        sq = jnp.where(valid, accs[f] * accs[f], jnp.float32(0.0))
        eacc_refs[f][...] = eacc_refs[f][...] + jnp.sum(sq, axis=1,
                                                        keepdims=True)

    @pl.when(t == nt - 1)
    def _():
        w_cls = w_cls_ref[...].astype(jnp.float32)     # (num_FIRs, C)
        num_classes = w_cls.shape[1]
        inv_t = jnp.float32(1.0 / t_out)
        logits = jnp.zeros((tb, num_classes), jnp.float32)
        for f in range(num_firs):                      # broadcast-MAC head
            feat_f = eacc_refs[f][...] * inv_t         # (TB, 1)
            logits = logits + feat_f * w_cls[f:f + 1, :]
        logits = logits + b_cls_ref[...].astype(jnp.float32)
        out_ref[...] = logits.astype(out_ref.dtype)


def m_bcb_learner_forward(x, w_fir, w_cls, b_cls, *, tb_max=64, tt_max=2048):
    """x: [B, T] (PyTorch input (B, 1, T) with channel squeezed);
    returns out: [B, num_classes] float32."""
    B, T = x.shape
    num_firs, len_firs = w_fir.shape
    num_classes = w_cls.shape[1]
    t_out = T - len_firs + 1
    assert t_out > 0, "signal must be at least len_FIRs long"
    halo = len_firs - 1
    lead = _round_up(halo, 128) if halo > 0 else 0

    # Batch blocking: TB rows per grid step (multiple of 8 sublanes).
    TB = tb_max if B >= tb_max else _round_up(B, 8)
    B_pad = _round_up(B, TB)

    # Time tiling: bounded VMEM regardless of T; lanes stay 128-aligned.
    TT = T if T <= tt_max else tt_max
    T_pad = _round_up(T, TT)
    nt = T_pad // TT

    pad_b, pad_t = B_pad - B, T_pad - T
    x_p = jnp.pad(x, ((0, pad_b), (0, pad_t))) if (pad_b or pad_t) else x

    kernel = functools.partial(_bcb_kernel, num_firs=num_firs,
                               len_firs=len_firs, t_out=t_out, tt=TT,
                               lead=lead)

    out = pl.pallas_call(
        kernel,
        out_shape=jax.ShapeDtypeStruct((B_pad, num_classes), jnp.float32),
        grid=(B_pad // TB, nt),
        in_specs=[
            pl.BlockSpec((TB, TT), lambda b, t: (b, t)),              # x tile
            pl.BlockSpec(memory_space=pltpu.MemorySpace.SMEM),        # taps
            pl.BlockSpec((num_firs, num_classes), lambda b, t: (0, 0)),  # W
            pl.BlockSpec((1, num_classes), lambda b, t: (0, 0)),      # bias
        ],
        out_specs=pl.BlockSpec((TB, num_classes), lambda b, t: (b, 0)),
        scratch_shapes=(
            [pltpu.VMEM((TB, lead + TT), jnp.float32),                # slab
             pltpu.VMEM((TB, max(halo, 1)), jnp.float32)]             # tail
            + [pltpu.VMEM((TB, 1), jnp.float32) for _ in range(num_firs)]
        ),
        compiler_params=pltpu.CompilerParams(
            dimension_semantics=("parallel", "arbitrary")),
    )(x_p, w_fir, w_cls, b_cls)
    return out[:B]


def _reference(x, w_fir, w_cls, b_cls):
    """Pure-JAX reference for a sanity check."""
    num_firs, len_firs = w_fir.shape
    t_out = x.shape[1] - len_firs + 1
    m = jnp.zeros((x.shape[0], num_firs, t_out), jnp.float32)
    for k in range(len_firs):
        m = m + w_fir[None, :, k:k + 1] * x[:, None, k:k + t_out]
    feat = jnp.mean(m * m, axis=2)
    return feat @ w_cls + b_cls


if __name__ == "__main__":
    # Small deterministic setup consistent with the module ctor.
    num_FIRs, len_FIRs, num_classes = 4, 8, 6

    key = jax.random.PRNGKey(0)
    kx, kf, kw, kb, kx2 = jax.random.split(key, 5)

    # PyTorch input would be (B, 1, T); kernel layout squeezes the channel dim.
    B, T = 2, 128
    x = jax.random.normal(kx, (B, T), dtype=jnp.float32)
    w_fir = 0.1 * jax.random.normal(kf, (num_FIRs, len_FIRs), dtype=jnp.float32)
    w_cls = 0.1 * jax.random.normal(kw, (num_FIRs, num_classes), dtype=jnp.float32)
    b_cls = 0.01 * jax.random.normal(kb, (1, num_classes), dtype=jnp.float32)

    out = jax.block_until_ready(m_bcb_learner_forward(x, w_fir, w_cls, b_cls))
    ref = _reference(x, w_fir, w_cls, b_cls)
    assert out.shape == (B, num_classes)
    assert jnp.allclose(out, ref, atol=1e-4, rtol=1e-4)

    # Second small check exercising the time-tiled path (multiple time tiles,
    # halo carry across tiles, batch + time padding).
    B2, T2 = 3, 300
    x2 = jax.random.normal(kx2, (B2, T2), dtype=jnp.float32)
    out2 = jax.block_until_ready(
        m_bcb_learner_forward(x2, w_fir, w_cls, b_cls, tt_max=128))
    ref2 = _reference(x2, w_fir, w_cls, b_cls)
    assert out2.shape == (B2, num_classes)
    assert jnp.allclose(out2, ref2, atol=1e-4, rtol=1e-4)

    print("KERNEL_OK")
</pallas_src>

<mosaic_0001>
module attributes {stable_mosaic.version = 11 : i64} {
  func.func @_bcb_kernel(%arg0: i32, %arg1: i32, %arg2: memref<8x128xf32, #tpu.memory_space<vmem>>, %arg3: memref<4x8xf32, #tpu.memory_space<smem>>, %arg4: memref<4x6xf32, #tpu.memory_space<vmem>>, %arg5: memref<1x6xf32, #tpu.memory_space<vmem>>, %arg6: memref<8x6xf32, #tpu.memory_space<vmem>>, %arg7: memref<8x256xf32, #tpu.memory_space<vmem>>, %arg8: memref<8x7xf32, #tpu.memory_space<vmem>>, %arg9: memref<8x1xf32, #tpu.memory_space<vmem>>, %arg10: memref<8x1xf32, #tpu.memory_space<vmem>>, %arg11: memref<8x1xf32, #tpu.memory_space<vmem>>, %arg12: memref<8x1xf32, #tpu.memory_space<vmem>>) attributes {dimension_semantics = [#tpu.dimension_semantics<parallel>, #tpu.dimension_semantics<arbitrary>], iteration_bounds = array<i64: 1, 1>, scalar_prefetch = 0 : i64, scratch_operands = 6 : i64, tpu.core_type = #tpu.core_type<tc>, window_params = [{transform_indices = @transform_0, window_bounds = array<i64: 8, 128>}, {transform_indices = @transform_1, window_bounds = array<i64: 4, 8>}, {pipeline_mode = #tpu.pipeline_mode<synchronous>, transform_indices = @transform_2, window_bounds = array<i64: 4, 6>}, {pipeline_mode = #tpu.pipeline_mode<synchronous>, transform_indices = @transform_3, window_bounds = array<i64: 1, 6>}, {transform_indices = @transform_4, window_bounds = array<i64: 8, 6>}]} {
    %c0_i32 = arith.constant 0 : i32
    %0 = arith.cmpi eq, %arg1, %c0_i32 : i32
    %1 = arith.extui %0 : i1 to i32
    %c0_i32_0 = arith.constant 0 : i32
    %2 = arith.cmpi ne, %1, %c0_i32_0 : i32
    scf.if %2 {
      %cst_105 = arith.constant 0.000000e+00 : f32
      %194 = vector.broadcast %cst_105 : f32 to vector<8x7xf32>
      %c0_106 = arith.constant 0 : index
      %c0_107 = arith.constant 0 : index
      %195 = vector.load %arg8[%c0_106, %c0_107] : memref<8x7xf32, #tpu.memory_space<vmem>>, vector<8x7xf32>
      tpu.vector_store %arg8[%c0_106, %c0_107], %194 {strides = array<i32>} : memref<8x7xf32, #tpu.memory_space<vmem>>, vector<8x7xf32>,
      %cst_108 = arith.constant 0.000000e+00 : f32
      %196 = vector.broadcast %cst_108 : f32 to vector<8x1xf32>
      %c0_109 = arith.constant 0 : index
      %c0_110 = arith.constant 0 : index
      %197 = vector.load %arg9[%c0_109, %c0_110] : memref<8x1xf32, #tpu.memory_space<vmem>>, vector<8x1xf32>
      tpu.vector_store %arg9[%c0_109, %c0_110], %196 {strides = array<i32>} : memref<8x1xf32, #tpu.memory_space<vmem>>, vector<8x1xf32>,
      %cst_111 = arith.constant 0.000000e+00 : f32
      %198 = vector.broadcast %cst_111 : f32 to vector<8x1xf32>
      %c0_112 = arith.constant 0 : index
      %c0_113 = arith.constant 0 : index
      %199 = vector.load %arg10[%c0_112, %c0_113] : memref<8x1xf32, #tpu.memory_space<vmem>>, vector<8x1xf32>
      tpu.vector_store %arg10[%c0_112, %c0_113], %198 {strides = array<i32>} : memref<8x1xf32, #tpu.memory_space<vmem>>, vector<8x1xf32>,
      %cst_114 = arith.constant 0.000000e+00 : f32
      %200 = vector.broadcast %cst_114 : f32 to vector<8x1xf32>
      %c0_115 = arith.constant 0 : index
      %c0_116 = arith.constant 0 : index
      %201 = vector.load %arg11[%c0_115, %c0_116] : memref<8x1xf32, #tpu.memory_space<vmem>>, vector<8x1xf32>
      tpu.vector_store %arg11[%c0_115, %c0_116], %200 {strides = array<i32>} : memref<8x1xf32, #tpu.memory_space<vmem>>, vector<8x1xf32>,
      %cst_117 = arith.constant 0.000000e+00 : f32
      %202 = vector.broadcast %cst_117 : f32 to vector<8x1xf32>
      %c0_118 = arith.constant 0 : index
      %c0_119 = arith.constant 0 : index
      %203 = vector.load %arg12[%c0_118, %c0_119] : memref<8x1xf32, #tpu.memory_space<vmem>>, vector<8x1xf32>
      tpu.vector_store %arg12[%c0_118, %c0_119], %202 {strides = array<i32>} : memref<8x1xf32, #tpu.memory_space<vmem>>, vector<8x1xf32>,
    } else {
    }
    %c0 = arith.constant 0 : index
    %c0_1 = arith.constant 0 : index
    %3 = vector.load %arg2[%c0, %c0_1] : memref<8x128xf32, #tpu.memory_space<vmem>>, vector<8x128xf32>
    %c0_2 = arith.constant 0 : index
    %c0_3 = arith.constant 0 : index
    %4 = vector.load %arg8[%c0_2, %c0_3] : memref<8x7xf32, #tpu.memory_space<vmem>>, vector<8x7xf32>
    %c0_4 = arith.constant 0 : index
    %c121 = arith.constant 121 : index
    %5 = vector.load %arg7[%c0_4, %c121] : memref<8x256xf32, #tpu.memory_space<vmem>>, vector<8x7xf32>
    tpu.vector_store %arg7[%c0_4, %c121], %4 {strides = array<i32>} : memref<8x256xf32, #tpu.memory_space<vmem>>, vector<8x7xf32>,
    %6 = vector.extract_strided_slice %3 {offsets = [0, 121], sizes = [8, 7], strides = [1, 1]} : vector<8x128xf32> to vector<8x7xf32>
    %c0_5 = arith.constant 0 : index
    %c0_6 = arith.constant 0 : index
    %7 = vector.load %arg8[%c0_5, %c0_6] : memref<8x7xf32, #tpu.memory_space<vmem>>, vector<8x7xf32>
    tpu.vector_store %arg8[%c0_5, %c0_6], %6 {strides = array<i32>} : memref<8x7xf32, #tpu.memory_space<vmem>>, vector<8x7xf32>,
    %c0_7 = arith.constant 0 : index
    %c128 = arith.constant 128 : index
    %8 = vector.load %arg7[%c0_7, %c128] : memref<8x256xf32, #tpu.memory_space<vmem>>, vector<8x128xf32>
    tpu.vector_store %arg7[%c0_7, %c128], %3 {strides = array<i32>} : memref<8x256xf32, #tpu.memory_space<vmem>>, vector<8x128xf32>,
    %c0_8 = arith.constant 0 : index
    %c0_9 = arith.constant 0 : index
    %9 = memref.load %arg3[%c0_8, %c0_9] : memref<4x8xf32, #tpu.memory_space<smem>>
    %c0_10 = arith.constant 0 : index
    %c1 = arith.constant 1 : index
    %10 = memref.load %arg3[%c0_10, %c1] : memref<4x8xf32, #tpu.memory_space<smem>>
    %c0_11 = arith.constant 0 : index
    %c2 = arith.constant 2 : index
    %11 = memref.load %arg3[%c0_11, %c2] : memref<4x8xf32, #tpu.memory_space<smem>>
    %c0_12 = arith.constant 0 : index
    %c3 = arith.constant 3 : index
    %12 = memref.load %arg3[%c0_12, %c3] : memref<4x8xf32, #tpu.memory_space<smem>>
    %c0_13 = arith.constant 0 : index
    %c4 = arith.constant 4 : index
    %13 = memref.load %arg3[%c0_13, %c4] : memref<4x8xf32, #tpu.memory_space<smem>>
    %c0_14 = arith.constant 0 : index
    %c5 = arith.constant 5 : index
    %14 = memref.load %arg3[%c0_14, %c5] : memref<4x8xf32, #tpu.memory_space<smem>>
    %c0_15 = arith.constant 0 : index
    %c6 = arith.constant 6 : index
    %15 = memref.load %arg3[%c0_15, %c6] : memref<4x8xf32, #tpu.memory_space<smem>>
    %c0_16 = arith.constant 0 : index
    %c7 = arith.constant 7 : index
    %16 = memref.load %arg3[%c0_16, %c7] : memref<4x8xf32, #tpu.memory_space<smem>>
    %c1_17 = arith.constant 1 : index
    %c0_18 = arith.constant 0 : index
    %17 = memref.load %arg3[%c1_17, %c0_18] : memref<4x8xf32, #tpu.memory_space<smem>>
    %c1_19 = arith.constant 1 : index
    %c1_20 = arith.constant 1 : index
    %18 = memref.load %arg3[%c1_19, %c1_20] : memref<4x8xf32, #tpu.memory_space<smem>>
    %c1_21 = arith.constant 1 : index
    %c2_22 = arith.constant 2 : index
    %19 = memref.load %arg3[%c1_21, %c2_22] : memref<4x8xf32, #tpu.memory_space<smem>>
    %c1_23 = arith.constant 1 : index
    %c3_24 = arith.constant 3 : index
    %20 = memref.load %arg3[%c1_23, %c3_24] : memref<4x8xf32, #tpu.memory_space<smem>>
    %c1_25 = arith.constant 1 : index
    %c4_26 = arith.constant 4 : index
    %21 = memref.load %arg3[%c1_25, %c4_26] : memref<4x8xf32, #tpu.memory_space<smem>>
    %c1_27 = arith.constant 1 : index
    %c5_28 = arith.constant 5 : index
    %22 = memref.load %arg3[%c1_27, %c5_28] : memref<4x8xf32, #tpu.memory_space<smem>>
    %c1_29 = arith.constant 1 : index
    %c6_30 = arith.constant 6 : index
    %23 = memref.load %arg3[%c1_29, %c6_30] : memref<4x8xf32, #tpu.memory_space<smem>>
    %c1_31 = arith.constant 1 : index
    %c7_32 = arith.constant 7 : index
    %24 = memref.load %arg3[%c1_31, %c7_32] : memref<4x8xf32, #tpu.memory_space<smem>>
    %c2_33 = arith.constant 2 : index
    %c0_34 = arith.constant 0 : index
    %25 = memref.load %arg3[%c2_33, %c0_34] : memref<4x8xf32, #tpu.memory_space<smem>>
    %c2_35 = arith.constant 2 : index
    %c1_36 = arith.constant 1 : index
    %26 = memref.load %arg3[%c2_35, %c1_36] : memref<4x8xf32, #tpu.memory_space<smem>>
    %c2_37 = arith.constant 2 : index
    %c2_38 = arith.constant 2 : index
    %27 = memref.load %arg3[%c2_37, %c2_38] : memref<4x8xf32, #tpu.memory_space<smem>>
    %c2_39 = arith.constant 2 : index
    %c3_40 = arith.constant 3 : index
    %28 = memref.load %arg3[%c2_39, %c3_40] : memref<4x8xf32, #tpu.memory_space<smem>>
    %c2_41 = arith.constant 2 : index
    %c4_42 = arith.constant 4 : index
    %29 = memref.load %arg3[%c2_41, %c4_42] : memref<4x8xf32, #tpu.memory_space<smem>>
    %c2_43 = arith.constant 2 : index
    %c5_44 = arith.constant 5 : index
    %30 = memref.load %arg3[%c2_43, %c5_44] : memref<4x8xf32, #tpu.memory_space<smem>>
    %c2_45 = arith.constant 2 : index
    %c6_46 = arith.constant 6 : index
    %31 = memref.load %arg3[%c2_45, %c6_46] : memref<4x8xf32, #tpu.memory_space<smem>>
    %c2_47 = arith.constant 2 : index
    %c7_48 = arith.constant 7 : index
    %32 = memref.load %arg3[%c2_47, %c7_48] : memref<4x8xf32, #tpu.memory_space<smem>>
    %c3_49 = arith.constant 3 : index
    %c0_50 = arith.constant 0 : index
    %33 = memref.load %arg3[%c3_49, %c0_50] : memref<4x8xf32, #tpu.memory_space<smem>>
    %c3_51 = arith.constant 3 : index
    %c1_52 = arith.constant 1 : index
    %34 = memref.load %arg3[%c3_51, %c1_52] : memref<4x8xf32, #tpu.memory_space<smem>>
    %c3_53 = arith.constant 3 : index
    %c2_54 = arith.constant 2 : index
    %35 = memref.load %arg3[%c3_53, %c2_54] : memref<4x8xf32, #tpu.memory_space<smem>>
    %c3_55 = arith.constant 3 : index
    %c3_56 = arith.constant 3 : index
    %36 = memref.load %arg3[%c3_55, %c3_56] : memref<4x8xf32, #tpu.memory_space<smem>>
    %c3_57 = arith.constant 3 : index
    %c4_58 = arith.constant 4 : index
    %37 = memref.load %arg3[%c3_57, %c4_58] : memref<4x8xf32, #tpu.memory_space<smem>>
    %c3_59 = arith.constant 3 : index
    %c5_60 = arith.constant 5 : index
    %38 = memref.load %arg3[%c3_59, %c5_60] : memref<4x8xf32, #tpu.memory_space<smem>>
    %c3_61 = arith.constant 3 : index
    %c6_62 = arith.constant 6 : index
    %39 = memref.load %arg3[%c3_61, %c6_62] : memref<4x8xf32, #tpu.memory_space<smem>>
    %c3_63 = arith.constant 3 : index
    %c7_64 = arith.constant 7 : index
    %40 = memref.load %arg3[%c3_63, %c7_64] : memref<4x8xf32, #tpu.memory_space<smem>>
    %cst = arith.constant 0.000000e+00 : f32
    %41 = vector.broadcast %cst : f32 to vector<8x128xf32>
    %cst_65 = arith.constant 0.000000e+00 : f32
    %42 = vector.broadcast %cst_65 : f32 to vector<8x128xf32>
    %cst_66 = arith.constant 0.000000e+00 : f32
    %43 = vector.broadcast %cst_66 : f32 to vector<8x128xf32>
    %cst_67 = arith.constant 0.000000e+00 : f32
    %44 = vector.broadcast %cst_67 : f32 to vector<8x128xf32>
    %c0_68 = arith.constant 0 : index
    %c121_69 = arith.constant 121 : index
    %45 = vector.load %arg7[%c0_68, %c121_69] : memref<8x256xf32, #tpu.memory_space<vmem>>, vector<8x128xf32>
    %46 = vector.broadcast %9 : f32 to vector<8x128xf32>
    %47 = arith.mulf %45, %46 : vector<8x128xf32>
    %48 = arith.addf %41, %47 : vector<8x128xf32>
    %49 = vector.broadcast %17 : f32 to vector<8x128xf32>
    %50 = arith.mulf %45, %49 : vector<8x128xf32>
    %51 = arith.addf %42, %50 : vector<8x128xf32>
    %52 = vector.broadcast %25 : f32 to vector<8x128xf32>
    %53 = arith.mulf %45, %52 : vector<8x128xf32>
    %54 = arith.addf %43, %53 : vector<8x128xf32>
    %55 = vector.broadcast %33 : f32 to vector<8x128xf32>
    %56 = arith.mulf %45, %55 : vector<8x128xf32>
    %57 = arith.addf %44, %56 : vector<8x128xf32>
    %c0_70 = arith.constant 0 : index
    %c122 = arith.constant 122 : index
    %58 = vector.load %arg7[%c0_70, %c122] : memref<8x256xf32, #tpu.memory_space<vmem>>, vector<8x128xf32>
    %59 = vector.broadcast %10 : f32 to vector<8x128xf32>
    %60 = arith.mulf %58, %59 : vector<8x128xf32>
    %61 = arith.addf %48, %60 : vector<8x128xf32>
    %62 = vector.broadcast %18 : f32 to vector<8x128xf32>
    %63 = arith.mulf %58, %62 : vector<8x128xf32>
    %64 = arith.addf %51, %63 : vector<8x128xf32>
    %65 = vector.broadcast %26 : f32 to vector<8x128xf32>
    %66 = arith.mulf %58, %65 : vector<8x128xf32>
    %67 = arith.addf %54, %66 : vector<8x128xf32>
    %68 = vector.broadcast %34 : f32 to vector<8x128xf32>
    %69 = arith.mulf %58, %68 : vector<8x128xf32>
    %70 = arith.addf %57, %69 : vector<8x128xf32>
    %c0_71 = arith.constant 0 : index
    %c123 = arith.constant 123 : index
    %71 = vector.load %arg7[%c0_71, %c123] : memref<8x256xf32, #tpu.memory_space<vmem>>, vector<8x128xf32>
    %72 = vector.broadcast %11 : f32 to vector<8x128xf32>
    %73 = arith.mulf %71, %72 : vector<8x128xf32>
    %74 = arith.addf %61, %73 : vector<8x128xf32>
    %75 = vector.broadcast %19 : f32 to vector<8x128xf32>
    %76 = arith.mulf %71, %75 : vector<8x128xf32>
    %77 = arith.addf %64, %76 : vector<8x128xf32>
    %78 = vector.broadcast %27 : f32 to vector<8x128xf32>
    %79 = arith.mulf %71, %78 : vector<8x128xf32>
    %80 = arith.addf %67, %79 : vector<8x128xf32>
    %81 = vector.broadcast %35 : f32 to vector<8x128xf32>
    %82 = arith.mulf %71, %81 : vector<8x128xf32>
    %83 = arith.addf %70, %82 : vector<8x128xf32>
    %c0_72 = arith.constant 0 : index
    %c124 = arith.constant 124 : index
    %84 = vector.load %arg7[%c0_72, %c124] : memref<8x256xf32, #tpu.memory_space<vmem>>, vector<8x128xf32>
    %85 = vector.broadcast %12 : f32 to vector<8x128xf32>
    %86 = arith.mulf %84, %85 : vector<8x128xf32>
    %87 = arith.addf %74, %86 : vector<8x128xf32>
    %88 = vector.broadcast %20 : f32 to vector<8x128xf32>
    %89 = arith.mulf %84, %88 : vector<8x128xf32>
    %90 = arith.addf %77, %89 : vector<8x128xf32>
    %91 = vector.broadcast %28 : f32 to vector<8x128xf32>
    %92 = arith.mulf %84, %91 : vector<8x128xf32>
    %93 = arith.addf %80, %92 : vector<8x128xf32>
    %94 = vector.broadcast %36 : f32 to vector<8x128xf32>
    %95 = arith.mulf %84, %94 : vector<8x128xf32>
    %96 = arith.addf %83, %95 : vector<8x128xf32>
    %c0_73 = arith.constant 0 : index
    %c125 = arith.constant 125 : index
    %97 = vector.load %arg7[%c0_73, %c125] : memref<8x256xf32, #tpu.memory_space<vmem>>, vector<8x128xf32>
    %98 = vector.broadcast %13 : f32 to vector<8x128xf32>
    %99 = arith.mulf %97, %98 : vector<8x128xf32>
    %100 = arith.addf %87, %99 : vector<8x128xf32>
    %101 = vector.broadcast %21 : f32 to vector<8x128xf32>
    %102 = arith.mulf %97, %101 : vector<8x128xf32>
    %103 = arith.addf %90, %102 : vector<8x128xf32>
    %104 = vector.broadcast %29 : f32 to vector<8x128xf32>
    %105 = arith.mulf %97, %104 : vector<8x128xf32>
    %106 = arith.addf %93, %105 : vector<8x128xf32>
    %107 = vector.broadcast %37 : f32 to vector<8x128xf32>
    %108 = arith.mulf %97, %107 : vector<8x128xf32>
    %109 = arith.addf %96, %108 : vector<8x128xf32>
    %c0_74 = arith.constant 0 : index
    %c126 = arith.constant 126 : index
    %110 = vector.load %arg7[%c0_74, %c126] : memref<8x256xf32, #tpu.memory_space<vmem>>, vector<8x128xf32>
    %111 = vector.broadcast %14 : f32 to vector<8x128xf32>
    %112 = arith.mulf %110, %111 : vector<8x128xf32>
    %113 = arith.addf %100, %112 : vector<8x128xf32>
    %114 = vector.broadcast %22 : f32 to vector<8x128xf32>
    %115 = arith.mulf %110, %114 : vector<8x128xf32>
    %116 = arith.addf %103, %115 : vector<8x128xf32>
    %117 = vector.broadcast %30 : f32 to vector<8x128xf32>
    %118 = arith.mulf %110, %117 : vector<8x128xf32>
    %119 = arith.addf %106, %118 : vector<8x128xf32>
    %120 = vector.broadcast %38 : f32 to vector<8x128xf32>
    %121 = arith.mulf %110, %120 : vector<8x128xf32>
    %122 = arith.addf %109, %121 : vector<8x128xf32>
    %c0_75 = arith.constant 0 : index
    %c127 = arith.constant 127 : index
    %123 = vector.load %arg7[%c0_75, %c127] : memref<8x256xf32, #tpu.memory_space<vmem>>, vector<8x128xf32>
    %124 = vector.broadcast %15 : f32 to vector<8x128xf32>
    %125 = arith.mulf %123, %124 : vector<8x128xf32>
    %126 = arith.addf %113, %125 : vector<8x128xf32>
    %127 = vector.broadcast %23 : f32 to vector<8x128xf32>
    %128 = arith.mulf %123, %127 : vector<8x128xf32>
    %129 = arith.addf %116, %128 : vector<8x128xf32>
    %130 = vector.broadcast %31 : f32 to vector<8x128xf32>
    %131 = arith.mulf %123, %130 : vector<8x128xf32>
    %132 = arith.addf %119, %131 : vector<8x128xf32>
    %133 = vector.broadcast %39 : f32 to vector<8x128xf32>
    %134 = arith.mulf %123, %133 : vector<8x128xf32>
    %135 = arith.addf %122, %134 : vector<8x128xf32>
    %c0_76 = arith.constant 0 : index
    %c128_77 = arith.constant 128 : index
    %136 = vector.load %arg7[%c0_76, %c128_77] : memref<8x256xf32, #tpu.memory_space<vmem>>, vector<8x128xf32>
    %137 = vector.broadcast %16 : f32 to vector<8x128xf32>
    %138 = arith.mulf %136, %137 : vector<8x128xf32>
    %139 = arith.addf %126, %138 : vector<8x128xf32>
    %140 = vector.broadcast %24 : f32 to vector<8x128xf32>
    %141 = arith.mulf %136, %140 : vector<8x128xf32>
    %142 = arith.addf %129, %141 : vector<8x128xf32>
    %143 = vector.broadcast %32 : f32 to vector<8x128xf32>
    %144 = arith.mulf %136, %143 : vector<8x128xf32>
    %145 = arith.addf %132, %144 : vector<8x128xf32>
    %146 = vector.broadcast %40 : f32 to vector<8x128xf32>
    %147 = arith.mulf %136, %146 : vector<8x128xf32>
    %148 = arith.addf %135, %147 : vector<8x128xf32>
    %149 = tpu.iota {dimensions = array<i32: 1>} : vector<8x128xi32>
    %c128_i32 = arith.constant 128 : i32
    %150 = arith.muli %arg1, %c128_i32 : i32
    %c7_i32 = arith.constant 7 : i32
    %151 = arith.subi %150, %c7_i32 : i32
    %152 = vector.broadcast %151 : i32 to vector<8x128xi32>
    %153 = arith.addi %152, %149 : vector<8x128xi32>
    %c0_i32_78 = arith.constant 0 : i32
    %154 = vector.broadcast %c0_i32_78 : i32 to vector<8x128xi32>
    %155 = arith.cmpi sge, %153, %154 : vector<8x128xi32>
    %c121_i32 = arith.constant 121 : i32
    %156 = vector.broadcast %c121_i32 : i32 to vector<8x128xi32>
    %157 = arith.cmpi slt, %153, %156 : vector<8x128xi32>
    %158 = arith.andi %155, %157 : vector<8x128xi1>
    %159 = arith.mulf %139, %139 : vector<8x128xf32>
    %cst_79 = arith.constant 0.000000e+00 : f32
    %160 = vector.broadcast %cst_79 : f32 to vector<8x128xf32>
    %161 = arith.select %158, %159, %160 : vector<8x128xi1>, vector<8x128xf32>
    %c0_80 = arith.constant 0 : index
    %c0_81 = arith.constant 0 : index
    %162 = vector.load %arg9[%c0_80, %c0_81] : memref<8x1xf32, #tpu.memory_space<vmem>>, vector<8x1xf32>
    %cst_82 = arith.constant dense<0.000000e+00> : vector<8xf32>
    %163 = vector.multi_reduction <add>, %161, %cst_82 [1] : vector<8x128xf32> to vector<8xf32>
    %164 = vector.shape_cast %163 : vector<8xf32> to vector<8x1xf32>
    %165 = arith.addf %162, %164 : vector<8x1xf32>
    %c0_83 = arith.constant 0 : index
    %c0_84 = arith.constant 0 : index
    %166 = vector.load %arg9[%c0_83, %c0_84] : memref<8x1xf32, #tpu.memory_space<vmem>>, vector<8x1xf32>
    tpu.vector_store %arg9[%c0_83, %c0_84], %165 {strides = array<i32>} : memref<8x1xf32, #tpu.memory_space<vmem>>, vector<8x1xf32>,
    %167 = arith.mulf %142, %142 : vector<8x128xf32>
    %cst_85 = arith.constant 0.000000e+00 : f32
    %168 = vector.broadcast %cst_85 : f32 to vector<8x128xf32>
    %169 = arith.select %158, %167, %168 : vector<8x128xi1>, vector<8x128xf32>
    %c0_86 = arith.constant 0 : index
    %c0_87 = arith.constant 0 : index
    %170 = vector.load %arg10[%c0_86, %c0_87] : memref<8x1xf32, #tpu.memory_space<vmem>>, vector<8x1xf32>
    %cst_88 = arith.constant dense<0.000000e+00> : vector<8xf32>
    %171 = vector.multi_reduction <add>, %169, %cst_88 [1] : vector<8x128xf32> to vector<8xf32>
    %172 = vector.shape_cast %171 : vector<8xf32> to vector<8x1xf32>
    %173 = arith.addf %170, %172 : vector<8x1xf32>
    %c0_89 = arith.constant 0 : index
    %c0_90 = arith.constant 0 : index
    %174 = vector.load %arg10[%c0_89, %c0_90] : memref<8x1xf32, #tpu.memory_space<vmem>>, vector<8x1xf32>
    tpu.vector_store %arg10[%c0_89, %c0_90], %173 {strides = array<i32>} : memref<8x1xf32, #tpu.memory_space<vmem>>, vector<8x1xf32>,
    %175 = arith.mulf %145, %145 : vector<8x128xf32>
    %cst_91 = arith.constant 0.000000e+00 : f32
    %176 = vector.broadcast %cst_91 : f32 to vector<8x128xf32>
    %177 = arith.select %158, %175, %176 : vector<8x128xi1>, vector<8x128xf32>
    %c0_92 = arith.constant 0 : index
    %c0_93 = arith.constant 0 : index
    %178 = vector.load %arg11[%c0_92, %c0_93] : memref<8x1xf32, #tpu.memory_space<vmem>>, vector<8x1xf32>
    %cst_94 = arith.constant dense<0.000000e+00> : vector<8xf32>
    %179 = vector.multi_reduction <add>, %177, %cst_94 [1] : vector<8x128xf32> to vector<8xf32>
    %180 = vector.shape_cast %179 : vector<8xf32> to vector<8x1xf32>
    %181 = arith.addf %178, %180 : vector<8x1xf32>
    %c0_95 = arith.constant 0 : index
    %c0_96 = arith.constant 0 : index
    %182 = vector.load %arg11[%c0_95, %c0_96] : memref<8x1xf32, #tpu.memory_space<vmem>>, vector<8x1xf32>
    tpu.vector_store %arg11[%c0_95, %c0_96], %181 {strides = array<i32>} : memref<8x1xf32, #tpu.memory_space<vmem>>, vector<8x1xf32>,
    %183 = arith.mulf %148, %148 : vector<8x128xf32>
    %cst_97 = arith.constant 0.000000e+00 : f32
    %184 = vector.broadcast %cst_97 : f32 to vector<8x128xf32>
    %185 = arith.select %158, %183, %184 : vector<8x128xi1>, vector<8x128xf32>
    %c0_98 = arith.constant 0 : index
    %c0_99 = arith.constant 0 : index
    %186 = vector.load %arg12[%c0_98, %c0_99] : memref<8x1xf32, #tpu.memory_space<vmem>>, vector<8x1xf32>
    %cst_100 = arith.constant dense<0.000000e+00> : vector<8xf32>
    %187 = vector.multi_reduction <add>, %185, %cst_100 [1] : vector<8x128xf32> to vector<8xf32>
    %188 = vector.shape_cast %187 : vector<8xf32> to vector<8x1xf32>
    %189 = arith.addf %186, %188 : vector<8x1xf32>
    %c0_101 = arith.constant 0 : index
    %c0_102 = arith.constant 0 : index
    %190 = vector.load %arg12[%c0_101, %c0_102] : memref<8x1xf32, #tpu.memory_space<vmem>>, vector<8x1xf32>
    tpu.vector_store %arg12[%c0_101, %c0_102], %189 {strides = array<i32>} : memref<8x1xf32, #tpu.memory_space<vmem>>, vector<8x1xf32>,
    %c0_i32_103 = arith.constant 0 : i32
    %191 = arith.cmpi eq, %arg1, %c0_i32_103 : i32
    %192 = arith.extui %191 : i1 to i32
    %c0_i32_104 = arith.constant 0 : i32
    %193 = arith.cmpi ne, %192, %c0_i32_104 : i32
    scf.if %193 {
      %c0_105 = arith.constant 0 : index
      %c0_106 = arith.constant 0 : index
      %194 = vector.load %arg4[%c0_105, %c0_106] : memref<4x6xf32, #tpu.memory_space<vmem>>, vector<4x6xf32>
      %cst_107 = arith.constant 0.000000e+00 : f32
      %195 = vector.broadcast %cst_107 : f32 to vector<8x6xf32>
      %c0_108 = arith.constant 0 : index
      %c0_109 = arith.constant 0 : index
      %196 = vector.load %arg9[%c0_108, %c0_109] : memref<8x1xf32, #tpu.memory_space<vmem>>, vector<8x1xf32>
      %cst_110 = arith.constant 0.00826446246 : f32
      %197 = vector.broadcast %cst_110 : f32 to vector<8x1xf32>
      %198 = arith.mulf %196, %197 : vector<8x1xf32>
      %199 = vector.extract_strided_slice %194 {offsets = [0, 0], sizes = [1, 6], strides = [1, 1]} : vector<4x6xf32> to vector<1x6xf32>
      %200 = vector.broadcast %198 : vector<8x1xf32> to vector<8x6xf32>
      %201 = vector.broadcast %199 : vector<1x6xf32> to vector<8x6xf32>
      %202 = arith.mulf %200, %201 : vector<8x6xf32>
      %203 = arith.addf %195, %202 : vector<8x6xf32>
      %c0_111 = arith.constant 0 : index
      %c0_112 = arith.constant 0 : index
      %204 = vector.load %arg10[%c0_111, %c0_112] : memref<8x1xf32, #tpu.memory_space<vmem>>, vector<8x1xf32>
      %cst_113 = arith.constant 0.00826446246 : f32
      %205 = vector.broadcast %cst_113 : f32 to vector<8x1xf32>
      %206 = arith.mulf %204, %205 : vector<8x1xf32>
      %207 = vector.extract_strided_slice %194 {offsets = [1, 0], sizes = [1, 6], strides = [1, 1]} : vector<4x6xf32> to vector<1x6xf32>
      %208 = vector.broadcast %206 : vector<8x1xf32> to vector<8x6xf32>
      %209 = vector.broadcast %207 : vector<1x6xf32> to vector<8x6xf32>
      %210 = arith.mulf %208, %209 : vector<8x6xf32>
      %211 = arith.addf %203, %210 : vector<8x6xf32>
      %c0_114 = arith.constant 0 : index
      %c0_115 = arith.constant 0 : index
      %212 = vector.load %arg11[%c0_114, %c0_115] : memref<8x1xf32, #tpu.memory_space<vmem>>, vector<8x1xf32>
      %cst_116 = arith.constant 0.00826446246 : f32
      %213 = vector.broadcast %cst_116 : f32 to vector<8x1xf32>
      %214 = arith.mulf %212, %213 : vector<8x1xf32>
      %215 = vector.extract_strided_slice %194 {offsets = [2, 0], sizes = [1, 6], strides = [1, 1]} : vector<4x6xf32> to vector<1x6xf32>
      %216 = vector.broadcast %214 : vector<8x1xf32> to vector<8x6xf32>
      %217 = vector.broadcast %215 : vector<1x6xf32> to vector<8x6xf32>
      %218 = arith.mulf %216, %217 : vector<8x6xf32>
      %219 = arith.addf %211, %218 : vector<8x6xf32>
      %c0_117 = arith.constant 0 : index
      %c0_118 = arith.constant 0 : index
      %220 = vector.load %arg12[%c0_117, %c0_118] : memref<8x1xf32, #tpu.memory_space<vmem>>, vector<8x1xf32>
      %cst_119 = arith.constant 0.00826446246 : f32
      %221 = vector.broadcast %cst_119 : f32 to vector<8x1xf32>
      %222 = arith.mulf %220, %221 : vector<8x1xf32>
      %223 = vector.extract_strided_slice %194 {offsets = [3, 0], sizes = [1, 6], strides = [1, 1]} : vector<4x6xf32> to vector<1x6xf32>
      %224 = vector.broadcast %222 : vector<8x1xf32> to vector<8x6xf32>
      %225 = vector.broadcast %223 : vector<1x6xf32> to vector<8x6xf32>
      %226 = arith.mulf %224, %225 : vector<8x6xf32>
      %227 = arith.addf %219, %226 : vector<8x6xf32>
      %c0_120 = arith.constant 0 : index
      %c0_121 = arith.constant 0 : index
      %228 = vector.load %arg5[%c0_120, %c0_121] : memref<1x6xf32, #tpu.memory_space<vmem>>, vector<1x6xf32>
      %229 = vector.broadcast %228 : vector<1x6xf32> to vector<8x6xf32>
      %230 = arith.addf %227, %229 : vector<8x6xf32>
      %c0_122 = arith.constant 0 : index
      %c0_123 = arith.constant 0 : index
      %231 = vector.load %arg6[%c0_122, %c0_123] : memref<8x6xf32, #tpu.memory_space<vmem>>, vector<8x6xf32>
      tpu.vector_store %arg6[%c0_122, %c0_123], %230 {strides = array<i32>} : memref<8x6xf32, #tpu.memory_space<vmem>>, vector<8x6xf32>,
    } else {
    }
    return
  }
  func.func @transform_0(%arg0: i32, %arg1: i32) -> (i32, i32) {
    %c0_i32 = arith.constant 0 : i32
    return %arg0, %arg1 : i32, i32
  }
  func.func @transform_1(%arg0: i32, %arg1: i32) -> (i32, i32) {
    %c0_i32 = arith.constant 0 : i32
    %c0_i32_0 = arith.constant 0 : i32
    %c0_i32_1 = arith.constant 0 : i32
    return %c0_i32, %c0_i32_0 : i32, i32
  }
  func.func @transform_2(%arg0: i32, %arg1: i32) -> (i32, i32) {
    %c0_i32 = arith.constant 0 : i32
    %c0_i32_0 = arith.constant 0 : i32
    %c0_i32_1 = arith.constant 0 : i32
    return %c0_i32, %c0_i32_0 : i32, i32
  }
  func.func @transform_3(%arg0: i32, %arg1: i32) -> (i32, i32) {
    %c0_i32 = arith.constant 0 : i32
    %c0_i32_0 = arith.constant 0 : i32
    %c0_i32_1 = arith.constant 0 : i32
    return %c0_i32, %c0_i32_0 : i32, i32
  }
  func.func @transform_4(%arg0: i32, %arg1: i32) -> (i32, i32) {
    %c0_i32 = arith.constant 0 : i32
    %c0_i32_0 = arith.constant 0 : i32
    return %arg0, %c0_i32 : i32, i32
  }
}

</mosaic_0001>

<llo_original>
// kernel: tpu_custom_call.1
$region0: #{tpu_custom_call.1}
  #allocation0 [shape = 'u32[]', space=smem, size = 0x4, offset = 0x4, fixed_abs, tag = 'smem constant byte address 0x4 - core index']
  #allocation1 [shape = 'u32[144,128]{1,0:T(1,128)}', space=vmem, size = 0x12000, scoped, tag = 'internal scratch']
  #allocation2 [shape = 'f32[8,256]{1,0:T(8,128)}', space=vmem, size = 0x2000, scoped, tag = 'scratch operand']
  #allocation3 [shape = 'f32[8,7]{1,0:T(8,128)}', space=vmem, size = 0x1000, scoped, tag = 'scratch operand']
  #allocation4 [shape = 'f32[8,1]{1,0:T(8,128)}', space=vmem, size = 0x1000, scoped, tag = 'scratch operand']
  #allocation5 [shape = 'f32[8,1]{1,0:T(8,128)}', space=vmem, size = 0x1000, scoped, tag = 'scratch operand']
  #allocation6 [shape = 'f32[8,1]{1,0:T(8,128)}', space=vmem, size = 0x1000, scoped, tag = 'scratch operand']
  #allocation7 [shape = 'f32[8,1]{1,0:T(8,128)}', space=vmem, size = 0x1000, scoped, tag = 'scratch operand']
  %s0 = inlined_call_operand.hbm [shape: f32[8,128], index: 0, kind: input, shape index: {}]
  %s1 = inlined_call_operand.hbm [shape: f32[4,8], index: 1, kind: input, shape index: {}]
  %s2 = inlined_call_operand.hbm [shape: f32[4,6], index: 2, kind: input, shape index: {}]
  %s3 = inlined_call_operand.vmem [shape: f32[1,6], index: 3, kind: input, shape index: {}]
  %s4 = inlined_call_operand.hbm [shape: f32[8,6], index: 4, kind: output, shape index: {}]
  %s5 = sld [smem:[#allocation0]]
  $region46: #{tpu_custom_call.1} parent=0
    _
  %s7 = ssub.s32 1, %s5
  %s8 = scalar_select 0, %s7, %s5
  $region1: #{tpu_custom_call.1} parent=0
    #allocation8 [shape = 'u8[4096]{0}', space=vmem, size = 0x1000, scoped, tag = 'input window, operand 0, single buffered']
    #allocation9 [shape = 's32[1]{0}', space=sflag, size = 0x4, scoped, tag = 'scoped memory for tpu_custom_call.1']
    #allocation10 [shape = 's32[1]{0}', space=sflag, size = 0x4, scoped, tag = 'scoped memory for tpu_custom_call.1']
    #allocation11 [shape = 's32[1]{0}', space=sflag, size = 0x4, scoped, tag = 'scoped memory for tpu_custom_call.1']
    #allocation12 [shape = 'u8[2048]{0}', space=smem, size = 0x800, scoped, tag = 'input window, operand 1, single buffered']
    #allocation13 [shape = 'u8[2048]{0}', space=vmem, size = 0x800, scoped, tag = 'input window, operand 2, single buffered']
    #allocation14 [shape = 's32[1]{0}', space=sflag, size = 0x4, scoped, tag = 'scoped memory for tpu_custom_call.1']
    #allocation15 [shape = 'u8[4096]{0}', space=vmem, size = 0x1000, scoped, tag = 'output window, operand 0, single buffered']
    %9 = vsyncpa [#allocation9], 0
    %10 = vsyncpa [#allocation11], 0
    %11 = vsyncpa [#allocation14], 0
    %12 = vsyncpa [#allocation10], 0
    // Predicated region
    $region2: #{tpu_custom_call.1} parent=1 // pred_check
      _
    $region3: #{tpu_custom_call.1} parent=1 // pred_check_branch
      %14 = sbr.rel (0) target = $region5
    $region4: #{tpu_custom_call.1} parent=1 // pred_region
      %s16 = ssub.s32 128, 128
      %17 = vsyncadd [#allocation9], %s16
      %s19 = sshll.u32 [#allocation8], 4
      %s20 = int_to_ptr.vmem [resolvable:$true] %s19
      %22 = dma.hbm_to_vmem [thread:$0]  %s0, 128, %s20, [#allocation9]
    $region5: #{tpu_custom_call.1} parent=1 // pred_fallthru
      _
    // Predicated region
    $region6: #{tpu_custom_call.1} parent=1 // pred_check
      _
    $region7: #{tpu_custom_call.1} parent=1 // pred_check_branch
      %24 = sbr.rel (0) target = $region9
    $region8: #{tpu_custom_call.1} parent=1 // pred_region
      %s26 = ssub.s32 64, 64
      %27 = vsyncadd [#allocation11], %s26
      %30 = dma.hbm_to_smem %s1, 64, [#allocation12], [#allocation11]
    $region9: #{tpu_custom_call.1} parent=1 // pred_fallthru
      _
    // Predicated region
    $region10: #{tpu_custom_call.1} parent=1 // pred_check
      _
    $region11: #{tpu_custom_call.1} parent=1 // pred_check_branch
      %32 = sbr.rel (0) target = $region13
    $region12: #{tpu_custom_call.1} parent=1 // pred_region
      %s34 = ssub.s32 64, 64
      %35 = vsyncadd [#allocation14], %s34
      %s37 = sshll.u32 [#allocation13], 4
      %s38 = int_to_ptr.vmem [resolvable:$true] %s37
      %40 = dma.hbm_to_vmem [thread:$0]  %s2, 64, %s38, [#allocation14]
    $region13: #{tpu_custom_call.1} parent=1 // pred_fallthru
      _
    // Predicated region
    $region14: #{tpu_custom_call.1} parent=1 // pred_check
      _
    $region15: #{tpu_custom_call.1} parent=1 // pred_check_branch
      %42 = sbr.rel (0) target = $region17
    $region16: #{tpu_custom_call.1} parent=1 // pred_region
      _
    $region17: #{tpu_custom_call.1} parent=1 // pred_fallthru
      _
    // Predicated region
    $region18: #{tpu_custom_call.1} parent=1 // pred_check
      _
    $region19: #{tpu_custom_call.1} parent=1 // pred_check_branch
      %44 = sbr.rel (0) target = $region21
    $region20: #{tpu_custom_call.1} parent=1 // pred_region
      %45 = dma.done [#allocation9], 128
    $region21: #{tpu_custom_call.1} parent=1 // pred_fallthru
      _
    // Predicated region
    $region22: #{tpu_custom_call.1} parent=1 // pred_check
      _
    $region23: #{tpu_custom_call.1} parent=1 // pred_check_branch
      %47 = sbr.rel (0) target = $region25
    $region24: #{tpu_custom_call.1} parent=1 // pred_region
      %48 = dma.done [#allocation11], 64
    $region25: #{tpu_custom_call.1} parent=1 // pred_fallthru
      _
    // Predicated region
    $region26: #{tpu_custom_call.1} parent=1 // pred_check
      _
    $region27: #{tpu_custom_call.1} parent=1 // pred_check_branch
      %50 = sbr.rel (0) target = $region29
    $region28: #{tpu_custom_call.1} parent=1 // pred_region
      %51 = dma.done [#allocation14], 64
    $region29: #{tpu_custom_call.1} parent=1 // pred_fallthru
      _
    %52 = sfence
    %p53 = scmp.eq.s32.totalorder 0, 0
    // Predicated region
    $region30: #{tpu_custom_call.1} parent=1 // pred_check
      %p54 = pneg %p53
    $region31: #{tpu_custom_call.1} parent=1 // pred_check_branch
      %56 = sbr.rel (%p54) target = $region33
    $region32: #{tpu_custom_call.1} parent=1 // pred_region
      %vm57 = vcmask 56320
      %58 = vst.msk [vmem:[#allocation3] sm:$0xff] %vm57, 0.0
      %vm59 = vcmask 7168
      %60 = vst.msk [vmem:[#allocation4] sm:$0xff] %vm59, 0.0
      %61 = vst.msk [vmem:[#allocation5] sm:$0xff] %vm59, 0.0
      %62 = vst.msk [vmem:[#allocation6] sm:$0xff] %vm59, 0.0
      %63 = vst.msk [vmem:[#allocation7] sm:$0xff] %vm59, 0.0
    $region33: #{tpu_custom_call.1} parent=1 // pred_fallthru
      _
    %v64 = vld [vmem:[#allocation8] sm:$0xff]
    %v65 = vld [vmem:[#allocation3] sm:$0xff]
    %67 = vrot.lane.b32.xlu0 %v65, 121
    %v68 = vpop.permute.xlu0 %67
    %vm70 = vcmask 1048520
    %71 = vst.msk [vmem:[#allocation2] sm:$0xff] %vm70, %v68
    %73 = vrot.lane.b32.xlu0 %v64, 7
    %v74 = vpop.permute.xlu0 %73
    %vm76 = vcmask 56320
    %77 = vst.msk [vmem:[#allocation3] sm:$0xff] %vm76, %v74
    %78 = vst [vmem:[#allocation2 + $0x8] sm:$0xff] %v64
    %s79 = sld [smem:[#allocation12]]
    %s80 = sld [smem:[#allocation12 + $0x1]]
    %s81 = sld [smem:[#allocation12 + $0x2]]
    %s82 = sld [smem:[#allocation12 + $0x3]]
    %s83 = sld [smem:[#allocation12 + $0x4]]
    %s84 = sld [smem:[#allocation12 + $0x5]]
    %s85 = sld [smem:[#allocation12 + $0x6]]
    %s86 = sld [smem:[#allocation12 + $0x7]]
    %s87 = sld [smem:[#allocation12 + $0x80]]
    %s88 = sld [smem:[#allocation12 + $0x81]]
    %s89 = sld [smem:[#allocation12 + $0x82]]
    %s90 = sld [smem:[#allocation12 + $0x83]]
    %s91 = sld [smem:[#allocation12 + $0x84]]
    %s92 = sld [smem:[#allocation12 + $0x85]]
    %s93 = sld [smem:[#allocation12 + $0x86]]
    %s94 = sld [smem:[#allocation12 + $0x87]]
    %s95 = sld [smem:[#allocation12 + $0x100]]
    %s96 = sld [smem:[#allocation12 + $0x101]]
    %s97 = sld [smem:[#allocation12 + $0x102]]
    %s98 = sld [smem:[#allocation12 + $0x103]]
    %s99 = sld [smem:[#allocation12 + $0x104]]
    %s100 = sld [smem:[#allocation12 + $0x105]]
    %s101 = sld [smem:[#allocation12 + $0x106]]
    %s102 = sld [smem:[#allocation12 + $0x107]]
    %s103 = sld [smem:[#allocation12 + $0x180]]
    %s104 = sld [smem:[#allocation12 + $0x181]]
    %s105 = sld [smem:[#allocation12 + $0x182]]
    %s106 = sld [smem:[#allocation12 + $0x183]]
    %s107 = sld [smem:[#allocation12 + $0x184]]
    %s108 = sld [smem:[#allocation12 + $0x185]]
    %s109 = sld [smem:[#allocation12 + $0x186]]
    %s110 = sld [smem:[#allocation12 + $0x187]]
    %v111 = vld [vmem:[#allocation2] sm:$0xff]
    %v112 = vld [vmem:[#allocation2 + $0x8] sm:$0xff]
    %v113 = vstv %s79
    %v114 = vmul.f32 %v111, %v113
    %v115 = vmul.f32 %v112, %v113
    %v116 = vadd.f32 %v114, 0.0
    %v117 = vadd.f32 %v115, 0.0
    %v118 = vstv %s87
    %v119 = vmul.f32 %v111, %v118
    %v120 = vmul.f32 %v112, %v118
    %v121 = vadd.f32 %v119, 0.0
    %v122 = vadd.f32 %v120, 0.0
    %v123 = vstv %s95
    %v124 = vmul.f32 %v111, %v123
    %v125 = vmul.f32 %v112, %v123
    %v126 = vadd.f32 %v124, 0.0
    %v127 = vadd.f32 %v125, 0.0
    %v128 = vstv %s103
    %v129 = vmul.f32 %v111, %v128
    %v130 = vmul.f32 %v112, %v128
    %v131 = vadd.f32 %v129, 0.0
    %v132 = vadd.f32 %v130, 0.0
    %v133 = vstv %s80
    %v134 = vmul.f32 %v111, %v133
    %v135 = vmul.f32 %v112, %v133
    %138 = vrot.lane.b32.xlu0 %v134, 127
    %v139 = vpop.permute.xlu0 %138
    %140 = vrot.lane.b32.xlu0 %v135, 127
    %v141 = vpop.permute.xlu0 %140
    %vm142 = vcmask 1039360
    %v143 = vsel %vm142, %v139, %v141
    %v146 = vadd.f32 %v116, %v143
    %v147 = vadd.f32 %v117, %v141
    %v148 = vstv %s88
    %v149 = vmul.f32 %v111, %v148
    %v150 = vmul.f32 %v112, %v148
    %153 = vrot.lane.b32.xlu0 %v149, 127
    %v154 = vpop.permute.xlu0 %153
    %155 = vrot.lane.b32.xlu0 %v150, 127
    %v156 = vpop.permute.xlu0 %155
    %v157 = vsel %vm142, %v154, %v156
    %v160 = vadd.f32 %v121, %v157
    %v161 = vadd.f32 %v122, %v156
    %v162 = vstv %s96
    %v163 = vmul.f32 %v111, %v162
    %v164 = vmul.f32 %v112, %v162
    %167 = vrot.lane.b32.xlu0 %v163, 127
    %v168 = vpop.permute.xlu0 %167
    %169 = vrot.lane.b32.xlu0 %v164, 127
    %v170 = vpop.permute.xlu0 %169
    %v171 = vsel %vm142, %v168, %v170
    %v174 = vadd.f32 %v126, %v171
    %v175 = vadd.f32 %v127, %v170
    %v176 = vstv %s104
    %v177 = vmul.f32 %v111, %v176
    %v178 = vmul.f32 %v112, %v176
    %181 = vrot.lane.b32.xlu0 %v177, 127
    %v182 = vpop.permute.xlu0 %181
    %183 = vrot.lane.b32.xlu0 %v178, 127
    %v184 = vpop.permute.xlu0 %183
    %v185 = vsel %vm142, %v182, %v184
    %v188 = vadd.f32 %v131, %v185
    %v189 = vadd.f32 %v132, %v184
    %v190 = vstv %s81
    %v191 = vmul.f32 %v111, %v190
    %v192 = vmul.f32 %v112, %v190
    %195 = vrot.lane.b32.xlu0 %v191, 126
    %v196 = vpop.permute.xlu0 %195
    %197 = vrot.lane.b32.xlu0 %v192, 126
    %v198 = vpop.permute.xlu0 %197
    %vm199 = vcmask 1031168
    %v200 = vsel %vm199, %v196, %v198
    %v203 = vadd.f32 %v146, %v200
    %v204 = vadd.f32 %v147, %v198
    %v205 = vstv %s89
    %v206 = vmul.f32 %v111, %v205
    %v207 = vmul.f32 %v112, %v205
    %210 = vrot.lane.b32.xlu0 %v206, 126
    %v211 = vpop.permute.xlu0 %210
    %212 = vrot.lane.b32.xlu0 %v207, 126
    %v213 = vpop.permute.xlu0 %212
    %v214 = vsel %vm199, %v211, %v213
    %v217 = vadd.f32 %v160, %v214
    %v218 = vadd.f32 %v161, %v213
    %v219 = vstv %s97
    %v220 = vmul.f32 %v111, %v219
    %v221 = vmul.f32 %v112, %v219
    %224 = vrot.lane.b32.xlu0 %v220, 126
    %v225 = vpop.permute.xlu0 %224
    %226 = vrot.lane.b32.xlu0 %v221, 126
    %v227 = vpop.permute.xlu0 %226
    %v228 = vsel %vm199, %v225, %v227
    %v231 = vadd.f32 %v174, %v228
    %v232 = vadd.f32 %v175, %v227
    %v233 = vstv %s105
    %v234 = vmul.f32 %v111, %v233
    %v235 = vmul.f32 %v112, %v233
    %238 = vrot.lane.b32.xlu0 %v234, 126
    %v239 = vpop.permute.xlu0 %238
    %240 = vrot.lane.b32.xlu0 %v235, 126
    %v241 = vpop.permute.xlu0 %240
    %v242 = vsel %vm199, %v239, %v241
    %v245 = vadd.f32 %v188, %v242
    %v246 = vadd.f32 %v189, %v241
    %v247 = vstv %s82
    %v248 = vmul.f32 %v111, %v247
    %v249 = vmul.f32 %v112, %v247
    %252 = vrot.lane.b32.xlu0 %v248, 125
    %v253 = vpop.permute.xlu0 %252
    %254 = vrot.lane.b32.xlu0 %v249, 125
    %v255 = vpop.permute.xlu0 %254
    %vm256 = vcmask 1022976
    %v257 = vsel %vm256, %v253, %v255
    %v260 = vadd.f32 %v203, %v257
    %v261 = vadd.f32 %v204, %v255
    %v262 = vstv %s90
    %v263 = vmul.f32 %v111, %v262
    %v264 = vmul.f32 %v112, %v262
    %267 = vrot.lane.b32.xlu0 %v263, 125
    %v268 = vpop.permute.xlu0 %267
    %269 = vrot.lane.b32.xlu0 %v264, 125
    %v270 = vpop.permute.xlu0 %269
    %v271 = vsel %vm256, %v268, %v270
    %v274 = vadd.f32 %v217, %v271
    %v275 = vadd.f32 %v218, %v270
    %v276 = vstv %s98
    %v277 = vmul.f32 %v111, %v276
    %v278 = vmul.f32 %v112, %v276
    %281 = vrot.lane.b32.xlu0 %v277, 125
    %v282 = vpop.permute.xlu0 %281
    %283 = vrot.lane.b32.xlu0 %v278, 125
    %v284 = vpop.permute.xlu0 %283
    %v285 = vsel %vm256, %v282, %v284
    %v288 = vadd.f32 %v231, %v285
    %v289 = vadd.f32 %v232, %v284
    %v290 = vstv %s106
    %v291 = vmul.f32 %v111, %v290
    %v292 = vmul.f32 %v112, %v290
    %295 = vrot.lane.b32.xlu0 %v291, 125
    %v296 = vpop.permute.xlu0 %295
    %297 = vrot.lane.b32.xlu0 %v292, 125
    %v298 = vpop.permute.xlu0 %297
    %v299 = vsel %vm256, %v296, %v298
    %v302 = vadd.f32 %v245, %v299
    %v303 = vadd.f32 %v246, %v298
    %v304 = vstv %s83
    %v305 = vmul.f32 %v111, %v304
    %v306 = vmul.f32 %v112, %v304
    %309 = vrot.lane.b32.xlu0 %v305, 124
    %v310 = vpop.permute.xlu0 %309
    %311 = vrot.lane.b32.xlu0 %v306, 124
    %v312 = vpop.permute.xlu0 %311
    %vm313 = vcmask 1014784
    %v314 = vsel %vm313, %v310, %v312
    %v317 = vadd.f32 %v260, %v314
    %v318 = vadd.f32 %v261, %v312
    %v319 = vstv %s91
    %v320 = vmul.f32 %v111, %v319
    %v321 = vmul.f32 %v112, %v319
    %324 = vrot.lane.b32.xlu0 %v320, 124
    %v325 = vpop.permute.xlu0 %324
    %326 = vrot.lane.b32.xlu0 %v321, 124
    %v327 = vpop.permute.xlu0 %326
    %v328 = vsel %vm313, %v325, %v327
    %v331 = vadd.f32 %v274, %v328
    %v332 = vadd.f32 %v275, %v327
    %v333 = vstv %s99
    %v334 = vmul.f32 %v111, %v333
    %v335 = vmul.f32 %v112, %v333
    %338 = vrot.lane.b32.xlu0 %v334, 124
    %v339 = vpop.permute.xlu0 %338
    %340 = vrot.lane.b32.xlu0 %v335, 124
    %v341 = vpop.permute.xlu0 %340
    %v342 = vsel %vm313, %v339, %v341
    %v345 = vadd.f32 %v288, %v342
    %v346 = vadd.f32 %v289, %v341
    %v347 = vstv %s107
    %v348 = vmul.f32 %v111, %v347
    %v349 = vmul.f32 %v112, %v347
    %352 = vrot.lane.b32.xlu0 %v348, 124
    %v353 = vpop.permute.xlu0 %352
    %354 = vrot.lane.b32.xlu0 %v349, 124
    %v355 = vpop.permute.xlu0 %354
    %v356 = vsel %vm313, %v353, %v355
    %v359 = vadd.f32 %v302, %v356
    %v360 = vadd.f32 %v303, %v355
    %v361 = vstv %s84
    %v362 = vmul.f32 %v111, %v361
    %v363 = vmul.f32 %v112, %v361
    %366 = vrot.lane.b32.xlu0 %v362, 123
    %v367 = vpop.permute.xlu0 %366
    %368 = vrot.lane.b32.xlu0 %v363, 123
    %v369 = vpop.permute.xlu0 %368
    %vm370 = vcmask 1006592
    %v371 = vsel %vm370, %v367, %v369
    %v374 = vadd.f32 %v317, %v371
    %v375 = vadd.f32 %v318, %v369
    %v376 = vstv %s92
    %v377 = vmul.f32 %v111, %v376
    %v378 = vmul.f32 %v112, %v376
    %381 = vrot.lane.b32.xlu0 %v377, 123
    %v382 = vpop.permute.xlu0 %381
    %383 = vrot.lane.b32.xlu0 %v378, 123
    %v384 = vpop.permute.xlu0 %383
    %v385 = vsel %vm370, %v382, %v384
    %v388 = vadd.f32 %v331, %v385
    %v389 = vadd.f32 %v332, %v384
    %v390 = vstv %s100
    %v391 = vmul.f32 %v111, %v390
    %v392 = vmul.f32 %v112, %v390
    %395 = vrot.lane.b32.xlu0 %v391, 123
    %v396 = vpop.permute.xlu0 %395
    %397 = vrot.lane.b32.xlu0 %v392, 123
    %v398 = vpop.permute.xlu0 %397
    %v399 = vsel %vm370, %v396, %v398
    %v402 = vadd.f32 %v345, %v399
    %v403 = vadd.f32 %v346, %v398
    %v404 = vstv %s108
    %v405 = vmul.f32 %v111, %v404
    %v406 = vmul.f32 %v112, %v404
    %409 = vrot.lane.b32.xlu0 %v405, 123
    %v410 = vpop.permute.xlu0 %409
    %411 = vrot.lane.b32.xlu0 %v406, 123
    %v412 = vpop.permute.xlu0 %411
    %v413 = vsel %vm370, %v410, %v412
    %v416 = vadd.f32 %v359, %v413
    %v417 = vadd.f32 %v360, %v412
    %v418 = vstv %s85
    %v419 = vmul.f32 %v111, %v418
    %v420 = vmul.f32 %v112, %v418
    %423 = vrot.lane.b32.xlu0 %v419, 122
    %v424 = vpop.permute.xlu0 %423
    %425 = vrot.lane.b32.xlu0 %v420, 122
    %v426 = vpop.permute.xlu0 %425
    %vm427 = vcmask 998400
    %v428 = vsel %vm427, %v424, %v426
    %v431 = vadd.f32 %v374, %v428
    %v432 = vadd.f32 %v375, %v426
    %v433 = vstv %s93
    %v434 = vmul.f32 %v111, %v433
    %v435 = vmul.f32 %v112, %v433
    %438 = vrot.lane.b32.xlu0 %v434, 122
    %v439 = vpop.permute.xlu0 %438
    %440 = vrot.lane.b32.xlu0 %v435, 122
    %v441 = vpop.permute.xlu0 %440
    %v442 = vsel %vm427, %v439, %v441
    %v445 = vadd.f32 %v388, %v442
    %v446 = vadd.f32 %v389, %v441
    %v447 = vstv %s101
    %v448 = vmul.f32 %v111, %v447
    %v449 = vmul.f32 %v112, %v447
    %452 = vrot.lane.b32.xlu0 %v448, 122
    %v453 = vpop.permute.xlu0 %452
    %454 = vrot.lane.b32.xlu0 %v449, 122
    %v455 = vpop.permute.xlu0 %454
    %v456 = vsel %vm427, %v453, %v455
    %v459 = vadd.f32 %v402, %v456
    %v460 = vadd.f32 %v403, %v455
    %v461 = vstv %s109
    %v462 = vmul.f32 %v111, %v461
    %v463 = vmul.f32 %v112, %v461
    %466 = vrot.lane.b32.xlu0 %v462, 122
    %v467 = vpop.permute.xlu0 %466
    %468 = vrot.lane.b32.xlu0 %v463, 122
    %v469 = vpop.permute.xlu0 %468
    %v470 = vsel %vm427, %v467, %v469
    %v473 = vadd.f32 %v416, %v470
    %v474 = vadd.f32 %v417, %v469
    %v475 = vstv %s86
    %v476 = vmul.f32 %v112, %v475
    %478 = vrot.lane.b32.xlu0 %v476, 121
    %v479 = vpop.permute.xlu0 %478
    %v481 = vadd.f32 %v431, %v479
    %v482 = vadd.f32 %v432, %v479
    %v483 = vstv %s94
    %v484 = vmul.f32 %v112, %v483
    %486 = vrot.lane.b32.xlu0 %v484, 121
    %v487 = vpop.permute.xlu0 %486
    %v489 = vadd.f32 %v445, %v487
    %v490 = vadd.f32 %v446, %v487
    %v491 = vstv %s102
    %v492 = vmul.f32 %v112, %v491
    %494 = vrot.lane.b32.xlu0 %v492, 121
    %v495 = vpop.permute.xlu0 %494
    %v497 = vadd.f32 %v459, %v495
    %v498 = vadd.f32 %v460, %v495
    %v499 = vstv %s110
    %v500 = vmul.f32 %v112, %v499
    %502 = vrot.lane.b32.xlu0 %v500, 121
    %v503 = vpop.permute.xlu0 %502
    %v505 = vadd.f32 %v473, %v503
    %v506 = vadd.f32 %v474, %v503
    %v507 = vlaneseq
    %v508 = vand.u32 %v507, 127
    %s509 = smul.u32 0, 128
    %s510 = ssub.s32 %s509, 7
    %v511 = vstv %s510
    %v512 = vadd.s32 %v511, %v508
    %vm513 = vcmp.ge.s32.totalorder %v512, 0
    %vm514 = vcmp.lt.s32.totalorder %v512, 121
    %vm515 = vmand %vm513, %vm514
    %v516 = vmul.f32 %v481, %v481
    %v517 = vmul.f32 %v482, %v482
    %520 = vrot.lane.b32.xlu0 %v516, 7
    %v521 = vpop.permute.xlu0 %520
    %522 = vrot.lane.b32.xlu0 %v517, 7
    %v523 = vpop.permute.xlu0 %522
    %v524 = vsel %vm76, %v521, %v523
    %v526 = vsel %vm515, %v524, 0.0
    %v527 = vld [vmem:[#allocation4] sm:$0xff]
    %528 = vadd.xlane.f32.xlu0 %v526
    %v529 = vpop.xlane.xlu0 %528
    %v530 = vadd.f32 %v527, %v529
    %vm531 = vcmask 7168
    %532 = vst.msk [vmem:[#allocation4] sm:$0xff] %vm531, %v530
    %v533 = vmul.f32 %v489, %v489
    %v534 = vmul.f32 %v490, %v490
    %537 = vrot.lane.b32.xlu0 %v533, 7
    %v538 = vpop.permute.xlu0 %537
    %539 = vrot.lane.b32.xlu0 %v534, 7
    %v540 = vpop.permute.xlu0 %539
    %v541 = vsel %vm76, %v538, %v540
    %v543 = vsel %vm515, %v541, 0.0
    %v544 = vld [vmem:[#allocation5] sm:$0xff]
    %545 = vadd.xlane.f32.xlu0 %v543
    %v546 = vpop.xlane.xlu0 %545
    %v547 = vadd.f32 %v544, %v546
    %548 = vst.msk [vmem:[#allocation5] sm:$0xff] %vm531, %v547
    %v549 = vmul.f32 %v497, %v497
    %v550 = vmul.f32 %v498, %v498
    %553 = vrot.lane.b32.xlu0 %v549, 7
    %v554 = vpop.permute.xlu0 %553
    %555 = vrot.lane.b32.xlu0 %v550, 7
    %v556 = vpop.permute.xlu0 %555
    %v557 = vsel %vm76, %v554, %v556
    %v559 = vsel %vm515, %v557, 0.0
    %v560 = vld [vmem:[#allocation6] sm:$0xff]
    %561 = vadd.xlane.f32.xlu0 %v559
    %v562 = vpop.xlane.xlu0 %561
    %v563 = vadd.f32 %v560, %v562
    %564 = vst.msk [vmem:[#allocation6] sm:$0xff] %vm531, %v563
    %v565 = vmul.f32 %v505, %v505
    %v566 = vmul.f32 %v506, %v506
    %569 = vrot.lane.b32.xlu0 %v565, 7
    %v570 = vpop.permute.xlu0 %569
    %571 = vrot.lane.b32.xlu0 %v566, 7
    %v572 = vpop.permute.xlu0 %571
    %v573 = vsel %vm76, %v570, %v572
    %v575 = vsel %vm515, %v573, 0.0
    %v576 = vld [vmem:[#allocation7] sm:$0xff]
    %577 = vadd.xlane.f32.xlu0 %v575
    %v578 = vpop.xlane.xlu0 %577
    %v579 = vadd.f32 %v576, %v578
    %580 = vst.msk [vmem:[#allocation7] sm:$0xff] %vm531, %v579
    // Predicated region
    $region34: #{tpu_custom_call.1} parent=1 // pred_check
      %p581 = pneg %p53
    $region35: #{tpu_custom_call.1} parent=1 // pred_check_branch
      %583 = sbr.rel (%p581) target = $region37
    $region36: #{tpu_custom_call.1} parent=1 // pred_region
      %v584 = vld [vmem:[#allocation13] sm:$0xf]
      %v585 = vld [vmem:[#allocation4] sm:$0xff]
      %v586 = vmul.f32 %v585, 0.008264462
      %588 = vset.pattern.permute.xlu0 0
      %589 = vperm.xlu0 %588, %v586
      %v590 = vpop.permute.xlu0 %589
      %v592 = vlaneseq
      %v593 = vshrl.u32 %v592, 7
      %v594 = vsub.s32 0, %v593
      %v595 = vrot.slane %v584, %v594
      %v596 = vmul.f32 %v590, %v595
      %v597 = vadd.f32 %v596, 0.0
      %v598 = vld [vmem:[#allocation5] sm:$0xff]
      %v599 = vmul.f32 %v598, 0.008264462
      %601 = vset.pattern.permute.xlu0 0
      %602 = vperm.xlu0 %601, %v599
      %v603 = vpop.permute.xlu0 %602
      %v605 = vlaneseq
      %v606 = vshrl.u32 %v605, 7
      %v607 = vsub.s32 1, %v606
      %v608 = vrot.slane %v584, %v607
      %v609 = vmul.f32 %v603, %v608
      %v610 = vadd.f32 %v597, %v609
      %v611 = vld [vmem:[#allocation6] sm:$0xff]
      %v612 = vmul.f32 %v611, 0.008264462
      %614 = vset.pattern.permute.xlu0 0
      %615 = vperm.xlu0 %614, %v612
      %v616 = vpop.permute.xlu0 %615
      %v618 = vlaneseq
      %v619 = vshrl.u32 %v618, 7
      %v620 = vsub.s32 2, %v619
      %v621 = vrot.slane %v584, %v620
      %v622 = vmul.f32 %v616, %v621
      %v623 = vadd.f32 %v610, %v622
      %v624 = vld [vmem:[#allocation7] sm:$0xff]
      %v625 = vmul.f32 %v624, 0.008264462
      %627 = vset.pattern.permute.xlu0 0
      %628 = vperm.xlu0 %627, %v625
      %v629 = vpop.permute.xlu0 %628
      %v631 = vlaneseq
      %v632 = vshrl.u32 %v631, 7
      %v633 = vsub.s32 3, %v632
      %v634 = vrot.slane %v584, %v633
      %v635 = vmul.f32 %v629, %v634
      %v636 = vadd.f32 %v623, %v635
      %v637 = vld [vmem:[%s3] sm:$0x1]
      %v639 = vlaneseq
      %v640 = vshrl.u32 %v639, 7
      %v641 = vsub.s32 0, %v640
      %v642 = vrot.slane %v637, %v641
      %v644 = vadd.f32 %v636, %v642
      %vm645 = vcmask 48128
      %646 = vst.msk [vmem:[#allocation15] sm:$0xff] %vm645, %v644
    $region37: #{tpu_custom_call.1} parent=1 // pred_fallthru
      _
    // Predicated region
    $region38: #{tpu_custom_call.1} parent=1 // pred_check
      _
    $region39: #{tpu_custom_call.1} parent=1 // pred_check_branch
      %648 = sbr.rel (0) target = $region41
    $region40: #{tpu_custom_call.1} parent=1 // pred_region
      %s650 = ssub.s32 128, 128
      %651 = vsyncadd [#allocation10], %s650
      %s653 = sshll.u32 [#allocation15], 4
      %s654 = int_to_ptr.vmem [resolvable:$true] %s653
      %656 = dma.vmem_to_hbm [thread:$0]  %s654, 128, %s4, [#allocation10]
    $region41: #{tpu_custom_call.1} parent=1 // pred_fallthru
      _
    // Predicated region
    $region42: #{tpu_custom_call.1} parent=1 // pred_check
      _
    $region43: #{tpu_custom_call.1} parent=1 // pred_check_branch
      %658 = sbr.rel (0) target = $region45
    $region44: #{tpu_custom_call.1} parent=1 // pred_region
      %659 = dma.done [#allocation10], 128
    $region45: #{tpu_custom_call.1} parent=1 // pred_fallthru
      _
    %660 = vsyncpa [#allocation9], 1
    %661 = vsyncpa [#allocation14], 1
    %662 = vsyncpa [#allocation10], 1
    %663 = vsyncpa [#allocation11], 1

</llo_original>
